<compile_context>
chip_gen: v7x
topology: tpu7x:2x2x1
jax: 0.10.0
libtpu: 0.0.40
codegen_flags: <defaults>
</compile_context>

<pallas_src>
from typing import NamedTuple

import jax
import jax.numpy as jnp
from jax.experimental import pallas as pl
from jax.experimental.pallas import tpu as pltpu


_VMEM_BUDGET_BYTES = 24 * 1024 * 1024   # conservative live-tile budget (all gens)
_VMEM_LIMIT_BYTES = 32 * 1024 * 1024    # explicit scoped limit (v5e default is 16 MiB)


def _round_up(x, m):
    return (x + m - 1) // m * m


# ----------------------------------------------------------------------------
# Kernel
# ----------------------------------------------------------------------------
def _proj_kernel(x_ref, w_ref, o_ref):
    # x_ref: (tm, D), w_ref: (tn, D) -> o_ref: (tm, tn), contracting on D.
    # NT-form dot_general on the MXU with f32 accumulation; the result is
    # written directly in the final output dtype (no post-kernel cast pass).
    # TODO(synk): on v5e, verify in the bundle dump that the NT form does not
    # re-transpose the resident weight slab per step; if it does, pre-transpose
    # the weight to [D, V] in prepare_output_projection.
    o_ref[...] = jax.lax.dot_general(
        x_ref[...],
        w_ref[...],
        dimension_numbers=(((1,), (1,)), ((), ())),
        preferred_element_type=jnp.float32,
    ).astype(o_ref.dtype)


# ----------------------------------------------------------------------------
# One-time weight preparation (hoisted out of the per-call forward)
# ----------------------------------------------------------------------------
class PreparedProjection(NamedTuple):
    weight: jax.Array   # [V_pad, D] in the compute dtype (bf16 by default)
    vocab_size: int     # original V (logits sliced back to this)
    tn: int             # vocab tile used to pad / tile the weight


def _choose_vocab_tile(V, D, w_bytes):
    """Largest lane-dense vocab tile whose double-buffered weight slab is modest."""
    V128 = _round_up(V, 128)
    # Keep 2 * tn * D * w_bytes (double-buffered weight slab) <= ~12 MiB.
    cap = max(256, (12 * 1024 * 1024) // (2 * D * w_bytes) // 128 * 128)
    if V128 <= min(2048, cap):
        return V128
    for cand in (2048, 1536, 1024, 768, 512, 384, 256):
        if cand <= cap and V % cand == 0:
            return cand
    return min(2048, cap)


def prepare_output_projection(weight, *, compute_dtype=jnp.bfloat16):
    """Cast + pad the [V, D] projection weight once; reuse for every forward."""
    V, D = weight.shape
    w_bytes = jnp.dtype(compute_dtype).itemsize
    tn = _choose_vocab_tile(V, D, w_bytes)
    V_pad = _round_up(V, tn)
    w = weight.astype(compute_dtype)
    if V_pad != V:
        w = jnp.pad(w, ((0, V_pad - V), (0, 0)))
    return PreparedProjection(weight=w, vocab_size=V, tn=tn)


# ----------------------------------------------------------------------------
# Tiled projection
# ----------------------------------------------------------------------------
def _choose_row_tile(M, tn, D, x_bytes, w_bytes, out_bytes):
    # 16-row alignment: bf16 packs two rows per sublane, so blocks below the
    # (16, 128) bf16 packing tile would force masked/packed relayouts.
    M16 = _round_up(M, 16)

    def fits(tm):
        live = 2 * (tm * D * x_bytes + tn * D * w_bytes + tm * tn * out_bytes)
        return live <= _VMEM_BUDGET_BYTES

    if M16 <= 1024 and fits(M16):
        return M16                      # single resident row tile (small-M fast path)

    best_tm, best_pad = 16, None
    for cand in (512, 448, 384, 320, 256, 192, 128, 64, 32, 16):
        if not fits(cand):
            continue
        pad = _round_up(M16, cand) - M16
        if best_pad is None or pad < best_pad:
            best_tm, best_pad = cand, pad
    return best_tm


def _projection(x2d, w, *, tm, tn, out_dtype):
    """x2d: [M, D], w: [V_pad, D] -> [M, V_pad] in out_dtype.

    Requires M % tm == 0 and V_pad % tn == 0.
    """
    M, D = x2d.shape
    V_pad, _ = w.shape
    out_bytes = jnp.dtype(out_dtype).itemsize

    cost = pl.CostEstimate(
        flops=2 * M * V_pad * D,
        transcendentals=0,
        bytes_accessed=(
            M * D * x2d.dtype.itemsize
            + V_pad * D * w.dtype.itemsize
            + M * V_pad * out_bytes
        ),
    )

    if M == tm:
        # Small-M fast path: x resident in VMEM, grid streams only vocab tiles.
        grid = (V_pad // tn,)
        in_specs = [
            pl.BlockSpec((tm, D), lambda j: (0, 0)),   # x (resident, DMA'd once)
            pl.BlockSpec((tn, D), lambda j: (j, 0)),   # weight tile [tn, D]
        ]
        out_specs = pl.BlockSpec((tm, tn), lambda j: (0, j))
        dims = ("parallel",)
    else:
        # Vocab tiles outer, row tiles inner -> weight block index constant
        # across the inner axis, so each weight slab is DMA'd once per j.
        grid = (V_pad // tn, M // tm)
        in_specs = [
            pl.BlockSpec((tm, D), lambda j, i: (i, 0)),
            pl.BlockSpec((tn, D), lambda j, i: (j, 0)),
        ]
        out_specs = pl.BlockSpec((tm, tn), lambda j, i: (i, j))
        dims = ("parallel", "parallel")

    return pl.pallas_call(
        _proj_kernel,
        out_shape=jax.ShapeDtypeStruct((M, V_pad), out_dtype),
        grid_spec=pl.GridSpec(grid=grid, in_specs=in_specs, out_specs=out_specs),
        compiler_params=pltpu.CompilerParams(
            dimension_semantics=dims,
            vmem_limit_bytes=_VMEM_LIMIT_BYTES,
        ),
        cost_estimate=cost,
    )(x2d, w)


# ----------------------------------------------------------------------------
# Forward (== TextDecoderPostnet.forward / output_layer)
# ----------------------------------------------------------------------------
def text_decoder_postnet_forward(x, projection, *, compute_dtype=jnp.bfloat16):
    """x: [B, T, D]; projection: PreparedProjection or raw [V, D] weight.

    Returns vocabulary logits [B, T, V] in x.dtype.
    """
    if not isinstance(projection, PreparedProjection):
        projection = prepare_output_projection(projection, compute_dtype=compute_dtype)
    w, V, tn = projection.weight, projection.vocab_size, projection.tn

    B, T, D = x.shape
    V_pad, Dw = w.shape
    assert D == Dw, (D, Dw)
    M = B * T
    out_dtype = x.dtype

    # TODO(synk): for very large D (>~8K) a reduction grid axis + f32 scratch
    # accumulator would be required; ArTST decoder_output_dim (<=1024) fits one tile.

    x2d = x.reshape(M, D).astype(w.dtype)

    x_bytes = w.dtype.itemsize
    out_bytes = jnp.dtype(out_dtype).itemsize
    tm = _choose_row_tile(M, tn, D, x_bytes, w.dtype.itemsize, out_bytes)
    M_pad = _round_up(M, tm)
    if M_pad != M:
        x2d = jnp.pad(x2d, ((0, M_pad - M), (0, 0)))

    out = _projection(x2d, w, tm=tm, tn=tn, out_dtype=out_dtype)   # [M_pad, V_pad]
    if M_pad != M or V_pad != V:
        out = out[:M, :V]
    return out.reshape(B, T, V)


# ----------------------------------------------------------------------------
# Self-test
# ----------------------------------------------------------------------------
if __name__ == "__main__":
    # Small shapes consistent with the module:
    #   decoder_output_dim D = 128, vocab size V = 256, batch B = 2, seq T = 8.
    B, T, D, V = 2, 8, 128, 256

    key = jax.random.PRNGKey(0)
    kx, kw = jax.random.split(key)
    x = jax.random.normal(kx, (B, T, D), dtype=jnp.float32)
    # nn.init.normal_(weight, mean=0, std=output_embed_dim ** -0.5)
    weight = (D ** -0.5) * jax.random.normal(kw, (V, D), dtype=jnp.float32)

    # One-time weight preparation (bf16 cast + padding hoisted off the fwd path).
    prep = prepare_output_projection(weight)
    fwd = jax.jit(lambda xx: text_decoder_postnet_forward(xx, prep))

    logits = jax.block_until_ready(fwd(x))
    assert logits.shape == (B, T, V), logits.shape
    assert logits.dtype == x.dtype, logits.dtype

    # Reference at the kernel's compute precision (bf16 inputs, f32 accumulate).
    xb = x.astype(jnp.bfloat16).astype(jnp.float32)
    wb = weight.astype(jnp.bfloat16).astype(jnp.float32)
    ref_bf16 = jnp.einsum("btd,vd->btv", xb, wb)
    assert jnp.allclose(logits, ref_bf16, atol=1e-3, rtol=1e-3)

    # Loose check against the full-f32 nn.Linear(bias=False) reference.
    ref_f32 = jnp.einsum("btd,vd->btv", x, weight)
    assert jnp.allclose(logits, ref_f32, atol=0.1, rtol=0.1)

    print("KERNEL_OK")
</pallas_src>

<mosaic_0001>
module attributes {stable_mosaic.version = 11 : i64} {
  func.func @_proj_kernel(%arg0: i32, %arg1: memref<16x128xbf16, #tpu.memory_space<vmem>>, %arg2: memref<256x128xbf16, #tpu.memory_space<vmem>>, %arg3: memref<16x256xf32, #tpu.memory_space<vmem>>) attributes {dimension_semantics = [#tpu.dimension_semantics<parallel>], iteration_bounds = array<i64: 1>, scalar_prefetch = 0 : i64, scratch_operands = 0 : i64, tpu.core_type = #tpu.core_type<tc>, window_params = [{pipeline_mode = #tpu.pipeline_mode<synchronous>, transform_indices = @transform_0, window_bounds = array<i64: 16, 128>}, {transform_indices = @transform_1, window_bounds = array<i64: 256, 128>}, {transform_indices = @transform_2, window_bounds = array<i64: 16, 256>}]} {
    %c0 = arith.constant 0 : index
    %c0_0 = arith.constant 0 : index
    %0 = vector.load %arg1[%c0, %c0_0] : memref<16x128xbf16, #tpu.memory_space<vmem>>, vector<16x128xbf16>
    %c0_1 = arith.constant 0 : index
    %c0_2 = arith.constant 0 : index
    %1 = vector.load %arg2[%c0_1, %c0_2] : memref<256x128xbf16, #tpu.memory_space<vmem>>, vector<256x128xbf16>
    %cst = arith.constant dense<0.000000e+00> : vector<16x256xf32>
    %2 = tpu.matmul %0, %1, %cst {dimension_numbers = #tpu.dot_dimension_numbers<[1], [1], [0], [0], [0, 0, 1, 0], [], []>} : vector<16x128xbf16>, vector<256x128xbf16>, vector<16x256xf32> -> vector<16x256xf32>
    %c0_3 = arith.constant 0 : index
    %c0_4 = arith.constant 0 : index
    %3 = vector.load %arg3[%c0_3, %c0_4] : memref<16x256xf32, #tpu.memory_space<vmem>>, vector<16x256xf32>
    tpu.vector_store %arg3[%c0_3, %c0_4], %2 {strides = array<i32>} : memref<16x256xf32, #tpu.memory_space<vmem>>, vector<16x256xf32>,
    return
  }
  func.func @transform_0(%arg0: i32) -> (i32, i32) {
    %c0_i32 = arith.constant 0 : i32
    %c0_i32_0 = arith.constant 0 : i32
    %c0_i32_1 = arith.constant 0 : i32
    return %c0_i32, %c0_i32_0 : i32, i32
  }
  func.func @transform_1(%arg0: i32) -> (i32, i32) {
    %c0_i32 = arith.constant 0 : i32
    %c0_i32_0 = arith.constant 0 : i32
    return %arg0, %c0_i32 : i32, i32
  }
  func.func @transform_2(%arg0: i32) -> (i32, i32) {
    %c0_i32 = arith.constant 0 : i32
    %c0_i32_0 = arith.constant 0 : i32
    return %c0_i32, %arg0 : i32, i32
  }
}

</mosaic_0001>

<llo_original>
// kernel: _lambda_.1
$region0: #{_lambda_.1}
  #allocation0 [shape = 'u32[]', space=smem, size = 0x4, offset = 0x4, fixed_abs, tag = 'smem constant byte address 0x4 - core index']
  #allocation1 [shape = 'u32[144,128]{1,0:T(1,128)}', space=vmem, size = 0x12000, scoped, tag = 'internal scratch']
  %s0 = inlined_call_operand.vmem [shape: bf16[16,128], index: 0, kind: input, shape index: {}]
  %s1 = inlined_call_operand.hbm [shape: bf16[256,128], index: 1, kind: input, shape index: {}]
  %s2 = inlined_call_operand.hbm [shape: f32[16,256], index: 2, kind: output, shape index: {}]
  %s3 = sld [smem:[#allocation0]]
  $region22: #{_lambda_.1} parent=0
    _
  %s5 = ssub.s32 1, %s3
  %s6 = scalar_select 0, %s5, %s3
  $region1: #{_lambda_.1} parent=0
    #allocation2 [shape = 'u8[65536]{0}', space=vmem, size = 0x10000, scoped, tag = 'input window, operand 1, single buffered']
    #allocation3 [shape = 's32[1]{0}', space=sflag, size = 0x4, scoped, tag = 'scoped memory for _lambda_.1']
    #allocation4 [shape = 's32[1]{0}', space=sflag, size = 0x4, scoped, tag = 'scoped memory for _lambda_.1']
    #allocation5 [shape = 'u8[16384]{0}', space=vmem, size = 0x4000, scoped, tag = 'output window, operand 0, single buffered']
    %7 = vsyncpa [#allocation3], 0
    %8 = vsyncpa [#allocation4], 0
    // Predicated region
    $region2: #{_lambda_.1} parent=1 // pred_check
      _
    $region3: #{_lambda_.1} parent=1 // pred_check_branch
      %10 = sbr.rel (0) target = $region5
    $region4: #{_lambda_.1} parent=1 // pred_region
      _
    $region5: #{_lambda_.1} parent=1 // pred_fallthru
      _
    // Predicated region
    $region6: #{_lambda_.1} parent=1 // pred_check
      _
    $region7: #{_lambda_.1} parent=1 // pred_check_branch
      %12 = sbr.rel (0) target = $region9
    $region8: #{_lambda_.1} parent=1 // pred_region
      %s14 = ssub.s32 2048, 2048
      %15 = vsyncadd [#allocation3], %s14
      %s16 = sshll.u32 [#allocation2], 4
      %s17 = int_to_ptr.vmem [resolvable:$true] %s16
      %22 = dma.hbm_to_vmem [thread:$0]  %s1, 2048, %s17, [#allocation3], 64, 64, 4
    $region9: #{_lambda_.1} parent=1 // pred_fallthru
      _
    // Predicated region
    $region10: #{_lambda_.1} parent=1 // pred_check
      _
    $region11: #{_lambda_.1} parent=1 // pred_check_branch
      %24 = sbr.rel (0) target = $region13
    $region12: #{_lambda_.1} parent=1 // pred_region
      %25 = dma.done [#allocation3], 2048
    $region13: #{_lambda_.1} parent=1 // pred_fallthru
      _
    %v27 = vld [vmem:[%s0] sm:$0xf]
    %v28 = vld [vmem:[%s0 + $0x4] sm:$0xf]
    %v29 = vld [vmem:[#allocation2] sm:$0xf]
    %v30 = vld [vmem:[#allocation2 + $0x4] sm:$0xf]
    %v31 = vld [vmem:[#allocation2 + $0x8] sm:$0xf]
    %v32 = vld [vmem:[#allocation2 + $0xc] sm:$0xf]
    %v33 = vld [vmem:[#allocation2 + $0x10] sm:$0xf]
    %v34 = vld [vmem:[#allocation2 + $0x14] sm:$0xf]
    %v35 = vld [vmem:[#allocation2 + $0x18] sm:$0xf]
    %v36 = vld [vmem:[#allocation2 + $0x1c] sm:$0xf]
    %v37 = vld [vmem:[#allocation2 + $0x20] sm:$0xf]
    %v38 = vld [vmem:[#allocation2 + $0x24] sm:$0xf]
    %v39 = vld [vmem:[#allocation2 + $0x28] sm:$0xf]
    %v40 = vld [vmem:[#allocation2 + $0x2c] sm:$0xf]
    %v41 = vld [vmem:[#allocation2 + $0x30] sm:$0xf]
    %v42 = vld [vmem:[#allocation2 + $0x34] sm:$0xf]
    %v43 = vld [vmem:[#allocation2 + $0x38] sm:$0xf]
    %v44 = vld [vmem:[#allocation2 + $0x3c] sm:$0xf]
    %v45 = vld [vmem:[#allocation2 + $0x40] sm:$0xf]
    %v46 = vld [vmem:[#allocation2 + $0x44] sm:$0xf]
    %v47 = vld [vmem:[#allocation2 + $0x48] sm:$0xf]
    %v48 = vld [vmem:[#allocation2 + $0x4c] sm:$0xf]
    %v49 = vld [vmem:[#allocation2 + $0x50] sm:$0xf]
    %v50 = vld [vmem:[#allocation2 + $0x54] sm:$0xf]
    %v51 = vld [vmem:[#allocation2 + $0x58] sm:$0xf]
    %v52 = vld [vmem:[#allocation2 + $0x5c] sm:$0xf]
    %v53 = vld [vmem:[#allocation2 + $0x60] sm:$0xf]
    %v54 = vld [vmem:[#allocation2 + $0x64] sm:$0xf]
    %v55 = vld [vmem:[#allocation2 + $0x68] sm:$0xf]
    %v56 = vld [vmem:[#allocation2 + $0x6c] sm:$0xf]
    %v57 = vld [vmem:[#allocation2 + $0x70] sm:$0xf]
    %v58 = vld [vmem:[#allocation2 + $0x74] sm:$0xf]
    %v59 = vld [vmem:[#allocation2 + $0x78] sm:$0xf]
    %v60 = vld [vmem:[#allocation2 + $0x7c] sm:$0xf]
    %v63 = vunpack.c.l.b16 %v27
    %v64 = vunpack.c.l.b16 %v28
    %v65 = vpack.c.b16 %v64, %v63
    %v99 = vunpack.c.l.b16 %v29
    %v100 = vunpack.c.l.b16 %v30
    %v101 = vunpack.c.l.b16 %v31
    %v102 = vunpack.c.l.b16 %v32
    %v103 = vunpack.c.l.b16 %v33
    %v104 = vunpack.c.l.b16 %v34
    %v105 = vunpack.c.l.b16 %v35
    %v106 = vunpack.c.l.b16 %v36
    %v107 = vunpack.c.l.b16 %v37
    %v108 = vunpack.c.l.b16 %v38
    %v109 = vunpack.c.l.b16 %v39
    %v110 = vunpack.c.l.b16 %v40
    %v111 = vunpack.c.l.b16 %v41
    %v112 = vunpack.c.l.b16 %v42
    %v113 = vunpack.c.l.b16 %v43
    %v114 = vunpack.c.l.b16 %v44
    %v115 = vunpack.c.l.b16 %v45
    %v116 = vunpack.c.l.b16 %v46
    %v117 = vunpack.c.l.b16 %v47
    %v118 = vunpack.c.l.b16 %v48
    %v119 = vunpack.c.l.b16 %v49
    %v120 = vunpack.c.l.b16 %v50
    %v121 = vunpack.c.l.b16 %v51
    %v122 = vunpack.c.l.b16 %v52
    %v123 = vunpack.c.l.b16 %v53
    %v124 = vunpack.c.l.b16 %v54
    %v125 = vunpack.c.l.b16 %v55
    %v126 = vunpack.c.l.b16 %v56
    %v127 = vunpack.c.l.b16 %v57
    %v128 = vunpack.c.l.b16 %v58
    %v129 = vunpack.c.l.b16 %v59
    %v130 = vunpack.c.l.b16 %v60
    %v131 = vpack.c.b16 %v100, %v99
    %v132 = vpack.c.b16 %v102, %v101
    %v133 = vpack.c.b16 %v104, %v103
    %v134 = vpack.c.b16 %v106, %v105
    %v135 = vpack.c.b16 %v108, %v107
    %v136 = vpack.c.b16 %v110, %v109
    %v137 = vpack.c.b16 %v112, %v111
    %v138 = vpack.c.b16 %v114, %v113
    %v139 = vpack.c.b16 %v116, %v115
    %v140 = vpack.c.b16 %v118, %v117
    %v141 = vpack.c.b16 %v120, %v119
    %v142 = vpack.c.b16 %v122, %v121
    %v143 = vpack.c.b16 %v124, %v123
    %v144 = vpack.c.b16 %v126, %v125
    %v145 = vpack.c.b16 %v128, %v127
    %v146 = vpack.c.b16 %v130, %v129
    %163 = vmatprep.subr.bf16.mxu0 0
    %164 = vmatpush1.bf16.xpose.msra.mxu0 %v131
    %165 = vmatprep.subr.bf16.mxu0 0
    %166 = vmatpush1.bf16.xpose.msra.mxu0 %v132
    %167 = vmatprep.subr.bf16.mxu0 0
    %168 = vmatpush1.bf16.xpose.msra.mxu0 %v133
    %169 = vmatprep.subr.bf16.mxu0 0
    %170 = vmatpush1.bf16.xpose.msra.mxu0 %v134
    %171 = vmatprep.subr.bf16.mxu0 0
    %172 = vmatpush1.bf16.xpose.msra.mxu0 %v135
    %173 = vmatprep.subr.bf16.mxu0 0
    %174 = vmatpush1.bf16.xpose.msra.mxu0 %v136
    %175 = vmatprep.subr.bf16.mxu0 0
    %176 = vmatpush1.bf16.xpose.msra.mxu0 %v137
    %177 = vmatprep.subr.bf16.mxu0 0
    %178 = vmatpush1.bf16.xpose.msra.mxu0 %v138
    %179 = vmatprep.subr.bf16.mxu0 0
    %180 = vmatpush1.bf16.xpose.msra.mxu0 %v139
    %181 = vmatprep.subr.bf16.mxu0 0
    %182 = vmatpush1.bf16.xpose.msra.mxu0 %v140
    %183 = vmatprep.subr.bf16.mxu0 0
    %184 = vmatpush1.bf16.xpose.msra.mxu0 %v141
    %185 = vmatprep.subr.bf16.mxu0 0
    %186 = vmatpush1.bf16.xpose.msra.mxu0 %v142
    %187 = vmatprep.subr.bf16.mxu0 0
    %188 = vmatpush1.bf16.xpose.msra.mxu0 %v143
    %189 = vmatprep.subr.bf16.mxu0 0
    %190 = vmatpush1.bf16.xpose.msra.mxu0 %v144
    %191 = vmatprep.subr.bf16.mxu0 0
    %192 = vmatpush1.bf16.xpose.msra.mxu0 %v145
    %193 = vmatprep.subr.bf16.mxu0 0
    %194 = vmatpush1.bf16.xpose.msra.mxu0 %v146
    %195 = vmatprep.mubr.bf16.mxu0 0
    %196 = vmatmul.mubr.bf16.gmra.mrb[0].mxu0 %v65
    %v197 = vpop.f32.mrb[0].mxu0
    %v198 = vadd.f32 0.0, %v197
    %v199 = vpop.f32.mrb[0].mxu0
    %v200 = vadd.f32 0.0, %v199
    %v201 = vpop.f32.mrb[0].mxu0
    %v202 = vadd.f32 0.0, %v201
    %v203 = vpop.f32.mrb[0].mxu0
    %v204 = vadd.f32 0.0, %v203
    %205 = vdwg.mxu0
    %206 = vst [vmem:[#allocation5] sm:$0xff] %v198
    %207 = vst [vmem:[#allocation5 + $0x8] sm:$0xff] %v200
    %208 = vst [vmem:[#allocation5 + $0x10] sm:$0xff] %v202
    %209 = vst [vmem:[#allocation5 + $0x18] sm:$0xff] %v204
    // Predicated region
    $region14: #{_lambda_.1} parent=1 // pred_check
      _
    $region15: #{_lambda_.1} parent=1 // pred_check_branch
      %211 = sbr.rel (0) target = $region17
    $region16: #{_lambda_.1} parent=1 // pred_region
      %s213 = ssub.s32 512, 512
      %214 = vsyncadd [#allocation4], %s213
      %s215 = sshll.u32 [#allocation5], 4
      %s216 = int_to_ptr.vmem [resolvable:$true] %s215
      %221 = dma.vmem_to_hbm [thread:$0]  %s216, 512, %s2, [#allocation4], 256, 256, 16
    $region17: #{_lambda_.1} parent=1 // pred_fallthru
      _
    // Predicated region
    $region18: #{_lambda_.1} parent=1 // pred_check
      _
    $region19: #{_lambda_.1} parent=1 // pred_check_branch
      %223 = sbr.rel (0) target = $region21
    $region20: #{_lambda_.1} parent=1 // pred_region
      %224 = dma.done [#allocation4], 512
    $region21: #{_lambda_.1} parent=1 // pred_fallthru
      _
    %225 = vsyncpa [#allocation3], 1
    %226 = vsyncpa [#allocation4], 1

</llo_original>
